<compile_context>
chip_gen: v5e
topology: v5e:2x2
jax: 0.10.0
libtpu: 0.0.40
codegen_flags: <defaults>
</compile_context>

<pallas_src>
import functools

import jax
import jax.numpy as jnp
from jax.experimental import pallas as pl
from jax.experimental.pallas import tpu as pltpu


def _round_up(n, m):
    return ((n + m - 1) // m) * m


def _ffn_kernel(x_ref, w1_ref, b1_ref, w2_ref, b2_ref, w3_ref, b3_ref, o_ref,
                *, norm_range):
    """Fused FFN tile: exp(relu(relu(x@W1+b1)@W2+b2)@W3+b3), range-normalized."""
    x = x_ref[...]                                            # bf16 (TM, D_in_p)

    # Layer 1: Linear + ReLU (bf16 MXU operands, f32 accumulation / epilogue).
    h1 = jnp.dot(x, w1_ref[...], preferred_element_type=jnp.float32) + b1_ref[...]
    h1 = jnp.maximum(h1, 0.0)

    # Layer 2: Linear + ReLU.
    h2 = jnp.dot(h1.astype(jnp.bfloat16), w2_ref[...],
                 preferred_element_type=jnp.float32) + b2_ref[...]
    h2 = jnp.maximum(h2, 0.0)

    # Layer 3: Linear.
    y = jnp.dot(h2.astype(jnp.bfloat16), w3_ref[...],
                preferred_element_type=jnp.float32) + b3_ref[...]

    # output_activation == 'exp'
    y = jnp.exp(y)

    # norm_range normalization: divide every row by the sum over [lo, hi).
    # Masked sum (no slice) keeps the tile in-register for arbitrary bounds.
    if norm_range is not None:
        lo, hi = norm_range
        col = jax.lax.broadcasted_iota(jnp.int32, y.shape, 1)
        mask = (col >= lo) & (col < hi)
        norm_sum = jnp.sum(jnp.where(mask, y, 0.0), axis=1, keepdims=True)
        y = y * pl.reciprocal(norm_sum, approx=False)

    o_ref[...] = y.astype(o_ref.dtype)

    # TODO(synk): training-mode dropout not implemented; inference semantics only.
    # TODO(synk): the pretrained ChemBERTa LLM backbone is an external checkpoint
    #             and is not translatable in-script; kernel consumes its logits.


def smile2spec_ffn(x, params, *, norm_range=None, tm=128):
    """Run the fused Smile2Spec FFN head on LLM logits `x` of shape (B, D_in).

    Weights are f32 (PyTorch layout transposed to (in, out)); they are cast to
    bf16 and zero-padded to lane-aligned shapes here. Output is f32 (B, D_out).
    """
    w1, b1, w2, b2, w3, b3 = params
    B, d_in = x.shape
    d_hid = w1.shape[1]
    d_out = w3.shape[1]

    # Lane-align contraction / output feature dims; tile-align the batch dim.
    d_in_p = _round_up(d_in, 128)
    d_out_p = _round_up(d_out, 128)
    b_p = _round_up(B, tm)

    def pad2(a, rows, cols, dtype):
        a = a.astype(dtype)
        return jnp.pad(a, ((0, rows - a.shape[0]), (0, cols - a.shape[1])))

    bf16, f32 = jnp.bfloat16, jnp.float32
    x_p = pad2(x, b_p, d_in_p, bf16)
    w1_p = pad2(w1, d_in_p, d_hid, bf16)          # extra K rows are zero
    b1_p = b1.astype(f32)
    w2_p = w2.astype(bf16)
    b2_p = b2.astype(f32)
    w3_p = pad2(w3, d_hid, d_out_p, bf16)         # extra out cols are zero
    b3_p = pad2(b3, 1, d_out_p, f32)

    kernel = functools.partial(_ffn_kernel, norm_range=norm_range)
    n_tiles = b_p // tm

    # Weights/biases: constant block index -> resident in VMEM, DMA'd once.
    resident = lambda shape: pl.BlockSpec(shape, lambda i: (0,) * len(shape))

    out_p = pl.pallas_call(
        kernel,
        out_shape=jax.ShapeDtypeStruct((b_p, d_out_p), jnp.float32),
        grid_spec=pltpu.PrefetchScalarGridSpec(
            num_scalar_prefetch=0,
            grid=(n_tiles,),
            in_specs=[
                pl.BlockSpec((tm, d_in_p), lambda i: (i, 0)),   # x tile
                resident(w1_p.shape), resident(b1_p.shape),
                resident(w2_p.shape), resident(b2_p.shape),
                resident(w3_p.shape), resident(b3_p.shape),
            ],
            out_specs=pl.BlockSpec((tm, d_out_p), lambda i: (i, 0)),
        ),
        compiler_params=pltpu.CompilerParams(
            # Batch tiles are independent -> parallel (megacore on v7x).
            dimension_semantics=("parallel",)),
        # NOTE: for production Smile2Spec shapes (2200 hidden / 1801 bins),
        # re-derive the VMEM budget (v7x: 64 MiB) and set vmem_limit_bytes /
        # add a K-tiled reduction axis if the resident weights don't fit.
    )(x_p, w1_p, b1_p, w2_p, b2_p, w3_p, b3_p)

    return out_p[:B, :d_out]


def init_params(key, d_in, d_hidden, d_out):
    """Deterministic synthetic parameters matching the module's FFN shapes."""
    ks = jax.random.split(key, 6)

    def lin(kw, kb, fan_in, fan_out):
        scale = 1.0 / jnp.sqrt(jnp.float32(fan_in))
        w = jax.random.uniform(kw, (fan_in, fan_out), jnp.float32, -scale, scale)
        b = jax.random.uniform(kb, (1, fan_out), jnp.float32, -scale, scale)
        return w, b

    w1, b1 = lin(ks[0], ks[1], d_in, d_hidden)
    w2, b2 = lin(ks[2], ks[3], d_hidden, d_hidden)
    w3, b3 = lin(ks[4], ks[5], d_hidden, d_out)
    return (w1, b1, w2, b2, w3, b3)


def reference(x, params, norm_range=None):
    """Pure-JAX reference with matching precision (bf16 matmuls, f32 epilogue)."""
    w1, b1, w2, b2, w3, b3 = params
    bf16 = jnp.bfloat16

    h = jnp.dot(x.astype(bf16), w1.astype(bf16),
                preferred_element_type=jnp.float32) + b1
    h = jnp.maximum(h, 0.0)
    h = jnp.dot(h.astype(bf16), w2.astype(bf16),
                preferred_element_type=jnp.float32) + b2
    h = jnp.maximum(h, 0.0)
    y = jnp.dot(h.astype(bf16), w3.astype(bf16),
                preferred_element_type=jnp.float32) + b3
    y = jnp.exp(y)
    if norm_range is not None:
        lo, hi = norm_range
        y = y / jnp.sum(y[:, lo:hi], axis=1, keepdims=True)
    return y


if __name__ == "__main__":
    # Small shapes consistent with the module (ffn_num_layers=3):
    # batch=200 (padded to 256 -> 2 grid tiles of TM=128),
    # ffn_input_dim=64 (padded to 128), ffn_hidden_size=128, ffn_output_dim=256.
    B, D_IN, D_HID, D_OUT = 200, 64, 128, 256
    NORM_RANGE = (10, 200)   # non-aligned range -> exercises the masked sum

    key = jax.random.PRNGKey(0)
    k_x, k_p = jax.random.split(key)
    x = 0.1 * jax.random.normal(k_x, (B, D_IN), jnp.float32)   # "LLM logits"
    params = init_params(k_p, D_IN, D_HID, D_OUT)

    out = smile2spec_ffn(x, params, norm_range=NORM_RANGE, tm=128)
    out = jax.block_until_ready(out)

    ref = reference(x, params, norm_range=NORM_RANGE)
    assert out.shape == (B, D_OUT)
    assert jnp.allclose(out, ref, rtol=1e-3, atol=1e-6), "mismatch vs reference"

    print("KERNEL_OK")
</pallas_src>

<mosaic_0001>
module attributes {stable_mosaic.version = 11 : i64} {
  func.func @_ffn_kernel(%arg0: i32, %arg1: memref<128x128xbf16, #tpu.memory_space<vmem>>, %arg2: memref<128x128xbf16, #tpu.memory_space<vmem>>, %arg3: memref<1x128xf32, #tpu.memory_space<vmem>>, %arg4: memref<128x128xbf16, #tpu.memory_space<vmem>>, %arg5: memref<1x128xf32, #tpu.memory_space<vmem>>, %arg6: memref<128x256xbf16, #tpu.memory_space<vmem>>, %arg7: memref<1x256xf32, #tpu.memory_space<vmem>>, %arg8: memref<128x256xf32, #tpu.memory_space<vmem>>) attributes {dimension_semantics = [#tpu.dimension_semantics<parallel>], iteration_bounds = array<i64: 2>, scalar_prefetch = 0 : i64, scratch_operands = 0 : i64, tpu.core_type = #tpu.core_type<tc>, window_params = [{transform_indices = @transform_0, window_bounds = array<i64: 128, 128>}, {pipeline_mode = #tpu.pipeline_mode<synchronous>, transform_indices = @transform_1, window_bounds = array<i64: 128, 128>}, {pipeline_mode = #tpu.pipeline_mode<synchronous>, transform_indices = @transform_2, window_bounds = array<i64: 1, 128>}, {pipeline_mode = #tpu.pipeline_mode<synchronous>, transform_indices = @transform_3, window_bounds = array<i64: 128, 128>}, {pipeline_mode = #tpu.pipeline_mode<synchronous>, transform_indices = @transform_4, window_bounds = array<i64: 1, 128>}, {pipeline_mode = #tpu.pipeline_mode<synchronous>, transform_indices = @transform_5, window_bounds = array<i64: 128, 256>}, {pipeline_mode = #tpu.pipeline_mode<synchronous>, transform_indices = @transform_6, window_bounds = array<i64: 1, 256>}, {transform_indices = @transform_7, window_bounds = array<i64: 128, 256>}]} {
    %c0 = arith.constant 0 : index
    %c0_0 = arith.constant 0 : index
    %0 = vector.load %arg1[%c0, %c0_0] : memref<128x128xbf16, #tpu.memory_space<vmem>>, vector<128x128xbf16>
    %c0_1 = arith.constant 0 : index
    %c0_2 = arith.constant 0 : index
    %1 = vector.load %arg2[%c0_1, %c0_2] : memref<128x128xbf16, #tpu.memory_space<vmem>>, vector<128x128xbf16>
    %cst = arith.constant dense<0.000000e+00> : vector<128x128xf32>
    %2 = tpu.matmul %0, %1, %cst {dimension_numbers = #tpu.dot_dimension_numbers<[1], [0], [0], [1], [0, 0, 1, 1], [], []>} : vector<128x128xbf16>, vector<128x128xbf16>, vector<128x128xf32> -> vector<128x128xf32>
    %c0_3 = arith.constant 0 : index
    %c0_4 = arith.constant 0 : index
    %3 = vector.load %arg3[%c0_3, %c0_4] : memref<1x128xf32, #tpu.memory_space<vmem>>, vector<1x128xf32>
    %4 = vector.broadcast %3 : vector<1x128xf32> to vector<128x128xf32>
    %5 = arith.addf %2, %4 : vector<128x128xf32>
    %cst_5 = arith.constant 0.000000e+00 : f32
    %6 = vector.broadcast %cst_5 : f32 to vector<128x128xf32>
    %7 = arith.maximumf %5, %6 : vector<128x128xf32>
    %8 = arith.truncf %7 : vector<128x128xf32> to vector<128x128xbf16>
    %c0_6 = arith.constant 0 : index
    %c0_7 = arith.constant 0 : index
    %9 = vector.load %arg4[%c0_6, %c0_7] : memref<128x128xbf16, #tpu.memory_space<vmem>>, vector<128x128xbf16>
    %cst_8 = arith.constant dense<0.000000e+00> : vector<128x128xf32>
    %10 = tpu.matmul %8, %9, %cst_8 {dimension_numbers = #tpu.dot_dimension_numbers<[1], [0], [0], [1], [0, 0, 1, 1], [], []>} : vector<128x128xbf16>, vector<128x128xbf16>, vector<128x128xf32> -> vector<128x128xf32>
    %c0_9 = arith.constant 0 : index
    %c0_10 = arith.constant 0 : index
    %11 = vector.load %arg5[%c0_9, %c0_10] : memref<1x128xf32, #tpu.memory_space<vmem>>, vector<1x128xf32>
    %12 = vector.broadcast %11 : vector<1x128xf32> to vector<128x128xf32>
    %13 = arith.addf %10, %12 : vector<128x128xf32>
    %cst_11 = arith.constant 0.000000e+00 : f32
    %14 = vector.broadcast %cst_11 : f32 to vector<128x128xf32>
    %15 = arith.maximumf %13, %14 : vector<128x128xf32>
    %16 = arith.truncf %15 : vector<128x128xf32> to vector<128x128xbf16>
    %c0_12 = arith.constant 0 : index
    %c0_13 = arith.constant 0 : index
    %17 = vector.load %arg6[%c0_12, %c0_13] : memref<128x256xbf16, #tpu.memory_space<vmem>>, vector<128x256xbf16>
    %cst_14 = arith.constant dense<0.000000e+00> : vector<128x256xf32>
    %18 = tpu.matmul %16, %17, %cst_14 {dimension_numbers = #tpu.dot_dimension_numbers<[1], [0], [0], [1], [0, 0, 1, 1], [], []>} : vector<128x128xbf16>, vector<128x256xbf16>, vector<128x256xf32> -> vector<128x256xf32>
    %c0_15 = arith.constant 0 : index
    %c0_16 = arith.constant 0 : index
    %19 = vector.load %arg7[%c0_15, %c0_16] : memref<1x256xf32, #tpu.memory_space<vmem>>, vector<1x256xf32>
    %20 = vector.broadcast %19 : vector<1x256xf32> to vector<128x256xf32>
    %21 = arith.addf %18, %20 : vector<128x256xf32>
    %22 = math.exp %21 : vector<128x256xf32>
    %23 = tpu.iota {dimensions = array<i32: 1>} : vector<128x256xi32>
    %c10_i32 = arith.constant 10 : i32
    %24 = vector.broadcast %c10_i32 : i32 to vector<128x256xi32>
    %25 = arith.cmpi sge, %23, %24 : vector<128x256xi32>
    %c200_i32 = arith.constant 200 : i32
    %26 = vector.broadcast %c200_i32 : i32 to vector<128x256xi32>
    %27 = arith.cmpi slt, %23, %26 : vector<128x256xi32>
    %28 = arith.andi %25, %27 : vector<128x256xi1>
    %cst_17 = arith.constant 0.000000e+00 : f32
    %29 = vector.broadcast %cst_17 : f32 to vector<128x256xf32>
    %30 = arith.select %28, %22, %29 : vector<128x256xi1>, vector<128x256xf32>
    %cst_18 = arith.constant dense<0.000000e+00> : vector<128xf32>
    %31 = vector.multi_reduction <add>, %30, %cst_18 [1] : vector<128x256xf32> to vector<128xf32>
    %32 = vector.shape_cast %31 : vector<128xf32> to vector<128x1xf32>
    %33 = tpu.reciprocal %32 : vector<128x1xf32> -> vector<128x1xf32>
    %34 = vector.broadcast %33 : vector<128x1xf32> to vector<128x256xf32>
    %35 = arith.mulf %22, %34 : vector<128x256xf32>
    %c0_19 = arith.constant 0 : index
    %c0_20 = arith.constant 0 : index
    %36 = vector.load %arg8[%c0_19, %c0_20] : memref<128x256xf32, #tpu.memory_space<vmem>>, vector<128x256xf32>
    tpu.vector_store %arg8[%c0_19, %c0_20], %35 {strides = array<i32>} : memref<128x256xf32, #tpu.memory_space<vmem>>, vector<128x256xf32>,
    return
  }
  func.func @transform_0(%arg0: i32) -> (i32, i32) {
    %c0_i32 = arith.constant 0 : i32
    %c0_i32_0 = arith.constant 0 : i32
    return %arg0, %c0_i32 : i32, i32
  }
  func.func @transform_1(%arg0: i32) -> (i32, i32) {
    %c0_i32 = arith.constant 0 : i32
    %c0_i32_0 = arith.constant 0 : i32
    %c0_i32_1 = arith.constant 0 : i32
    return %c0_i32, %c0_i32_0 : i32, i32
  }
  func.func @transform_2(%arg0: i32) -> (i32, i32) {
    %c0_i32 = arith.constant 0 : i32
    %c0_i32_0 = arith.constant 0 : i32
    %c0_i32_1 = arith.constant 0 : i32
    return %c0_i32, %c0_i32_0 : i32, i32
  }
  func.func @transform_3(%arg0: i32) -> (i32, i32) {
    %c0_i32 = arith.constant 0 : i32
    %c0_i32_0 = arith.constant 0 : i32
    %c0_i32_1 = arith.constant 0 : i32
    return %c0_i32, %c0_i32_0 : i32, i32
  }
  func.func @transform_4(%arg0: i32) -> (i32, i32) {
    %c0_i32 = arith.constant 0 : i32
    %c0_i32_0 = arith.constant 0 : i32
    %c0_i32_1 = arith.constant 0 : i32
    return %c0_i32, %c0_i32_0 : i32, i32
  }
  func.func @transform_5(%arg0: i32) -> (i32, i32) {
    %c0_i32 = arith.constant 0 : i32
    %c0_i32_0 = arith.constant 0 : i32
    %c0_i32_1 = arith.constant 0 : i32
    return %c0_i32, %c0_i32_0 : i32, i32
  }
  func.func @transform_6(%arg0: i32) -> (i32, i32) {
    %c0_i32 = arith.constant 0 : i32
    %c0_i32_0 = arith.constant 0 : i32
    %c0_i32_1 = arith.constant 0 : i32
    return %c0_i32, %c0_i32_0 : i32, i32
  }
  func.func @transform_7(%arg0: i32) -> (i32, i32) {
    %c0_i32 = arith.constant 0 : i32
    %c0_i32_0 = arith.constant 0 : i32
    return %arg0, %c0_i32 : i32, i32
  }
}

</mosaic_0001>

<llo_original>
// kernel: tpu_custom_call.1
$region0: #{tpu_custom_call.1}
  #allocation0 [shape = 'u32[]', space=smem, size = 0x4, offset = 0x4, fixed_abs, tag = 'smem constant byte address 0x4 - core index']
  #allocation1 [shape = 'u32[72,128]{1,0:T(1,128)}', space=vmem, size = 0x9000, scoped, tag = 'internal scratch']
  %s0 = inlined_call_operand.hbm [shape: bf16[256,128], index: 0, kind: input, shape index: {}]
  %s1 = inlined_call_operand.hbm [shape: bf16[128,128], index: 1, kind: input, shape index: {}]
  %s2 = inlined_call_operand.vmem [shape: f32[1,128], index: 2, kind: input, shape index: {}]
  %s3 = inlined_call_operand.hbm [shape: bf16[128,128], index: 3, kind: input, shape index: {}]
  %s4 = inlined_call_operand.hbm [shape: f32[1,128], index: 4, kind: input, shape index: {}]
  %s5 = inlined_call_operand.hbm [shape: bf16[128,256], index: 5, kind: input, shape index: {}]
  %s6 = inlined_call_operand.vmem [shape: f32[1,256], index: 6, kind: input, shape index: {}]
  %s7 = inlined_call_operand.hbm [shape: f32[256,256], index: 7, kind: output, shape index: {}]
  %s8 = sld [smem:[#allocation0]]
  $region81: #{tpu_custom_call.1} parent=0
    _
  %s10 = ssub.s32 1, %s8
  %s11 = scalar_select 0, %s10, %s8
  $region1: #{tpu_custom_call.1} parent=0
    #allocation2 [shape = 'u8[65536]{0}', space=vmem, size = 0x10000, scoped, tag = 'input window, operand 0']
    #allocation3 [shape = 's32[2]{0}', space=sflag, size = 0x8, scoped, tag = 'scoped memory for tpu_custom_call.1']
    #allocation4 [shape = 's32[2]{0}', space=sflag, size = 0x8, scoped, tag = 'scoped memory for tpu_custom_call.1']
    #allocation5 [shape = 'u8[32768]{0}', space=vmem, size = 0x8000, scoped, tag = 'input window, operand 1, single buffered']
    #allocation6 [shape = 's32[1]{0}', space=sflag, size = 0x4, scoped, tag = 'scoped memory for tpu_custom_call.1']
    #allocation7 [shape = 'u8[32768]{0}', space=vmem, size = 0x8000, scoped, tag = 'input window, operand 3, single buffered']
    #allocation8 [shape = 'u8[512]{0}', space=vmem, size = 0x400, scoped, tag = 'input window, operand 4, single buffered']
    #allocation9 [shape = 's32[1]{0}', space=sflag, size = 0x4, scoped, tag = 'scoped memory for tpu_custom_call.1']
    #allocation10 [shape = 'u8[65536]{0}', space=vmem, size = 0x10000, scoped, tag = 'input window, operand 5, single buffered']
    #allocation11 [shape = 'u8[262144]{0}', space=vmem, size = 0x40000, scoped, tag = 'output window, operand 0']
    %12 = vsyncpa [#allocation3], 0
    %s13 = scalar_lea.sflag [#allocation3], 1
    %14 = vsyncpa %s13, 0
    %15 = vsyncpa [#allocation6], 0
    %16 = vsyncpa [#allocation9], 0
    %17 = vsyncpa [#allocation4], 0
    %s18 = scalar_lea.sflag [#allocation4], 1
    %19 = vsyncpa %s18, 0
    loop: start=0, step=1, limit=4
    $region2: #{tpu_custom_call.1} parent=1 // loop_pre_header
      _
    $region3: #{tpu_custom_call.1} parent=1 // loop_header
      %s21 = sphi 0, %s25
      %p22 = scmp.ge.s32.totalorder %s21, 4
      %s31 = sphi 0, %s33
      %s34 = sphi 0, %s31
      %s35 = sphi 0, %s34
      %s51 = sphi 0, %s35
      %s55 = sphi 0, %s55
      %s57 = sphi 0, %s55
      %s58 = sphi 0, %s57
      %s72 = sphi 0, %s58
      %s76 = sphi 0, %s76
      %s78 = sphi 0, %s76
      %s79 = sphi 0, %s78
      %s93 = sphi 0, %s79
      %s97 = sphi 0, %s97
      %s99 = sphi 0, %s97
      %s100 = sphi 0, %s99
      %s114 = sphi 0, %s100
      %s118 = sphi 0, %s118
      %s120 = sphi 0, %s118
      %s121 = sphi 0, %s120
      %s135 = sphi 0, %s121
      %s139 = sphi 0, %s139
      %s141 = sphi 0, %s139
      %s142 = sphi 0, %s141
      %s156 = sphi 0, %s142
      %s160 = sphi 0, %s160
      %s162 = sphi 0, %s160
      %s163 = sphi 0, %s162
      %s177 = sphi 0, %s163
      %s183 = sphi 0, %s185
      %s186 = sphi 0, %s183
      %s187 = sphi 0, %s186
      %s203 = sphi 0, %s187
    $region4: #{tpu_custom_call.1} parent=1 // loop_header_branch
      %24 = sbr.rel (%p22) target = $region8
    $region5: #{tpu_custom_call.1} parent=1 // loop_body
      %s26 = ssub.s32 %s21, 1
      %s27 = ssub.s32 %s21, 2
      %s28 = sadd.s32 %s21, 1
      %s29 = ssub.s32 %s21, %s28
      %p30 = scmp.eq.s32.totalorder %s29, 0
      %s32 = sadd.s32 %s31, 1
      %s33 = scalar_select %p30, %s31, %s32
      %p36 = pneg %p30
      %p37 = scmp.eq.s32.totalorder %s21, 1
      %p38 = por %p36, %p37
      %p39 = scmp.ne.s32.totalorder %s31, %s34
      %p40 = scmp.eq.s32.totalorder %s21, 0
      %p41 = por %p39, %p40
      %p42 = scmp.ne.s32.totalorder %s31, %s34
      %p43 = scmp.eq.s32.totalorder %s26, 1
      %p44 = por %p42, %p43
      %p45 = scmp.ne.s32.totalorder %s34, %s35
      %p46 = scmp.eq.s32.totalorder %s26, 0
      %p47 = por %p45, %p46
      %p48 = scmp.ne.s32.totalorder %s34, %s35
      %p49 = scmp.eq.s32.totalorder %s27, 1
      %p50 = por %p48, %p49
      %p52 = scmp.ne.s32.totalorder %s35, %s51
      %p53 = scmp.eq.s32.totalorder %s27, 0
      %p54 = por %p52, %p53
      %s56 = sadd.s32 %s55, 1
      %p59 = scmp.eq.s32.totalorder %s21, 1
      %p60 = scmp.ne.s32.totalorder %s55, %s57
      %p61 = scmp.eq.s32.totalorder %s21, 0
      %p62 = por %p60, %p61
      %p63 = scmp.ne.s32.totalorder %s55, %s57
      %p64 = scmp.eq.s32.totalorder %s26, 1
      %p65 = por %p63, %p64
      %p66 = scmp.ne.s32.totalorder %s57, %s58
      %p67 = scmp.eq.s32.totalorder %s26, 0
      %p68 = por %p66, %p67
      %p69 = scmp.ne.s32.totalorder %s57, %s58
      %p70 = scmp.eq.s32.totalorder %s27, 1
      %p71 = por %p69, %p70
      %p73 = scmp.ne.s32.totalorder %s58, %s72
      %p74 = scmp.eq.s32.totalorder %s27, 0
      %p75 = por %p73, %p74
      %s77 = sadd.s32 %s76, 1
      %p80 = scmp.eq.s32.totalorder %s21, 1
      %p81 = scmp.ne.s32.totalorder %s76, %s78
      %p82 = scmp.eq.s32.totalorder %s21, 0
      %p83 = por %p81, %p82
      %p84 = scmp.ne.s32.totalorder %s76, %s78
      %p85 = scmp.eq.s32.totalorder %s26, 1
      %p86 = por %p84, %p85
      %p87 = scmp.ne.s32.totalorder %s78, %s79
      %p88 = scmp.eq.s32.totalorder %s26, 0
      %p89 = por %p87, %p88
      %p90 = scmp.ne.s32.totalorder %s78, %s79
      %p91 = scmp.eq.s32.totalorder %s27, 1
      %p92 = por %p90, %p91
      %p94 = scmp.ne.s32.totalorder %s79, %s93
      %p95 = scmp.eq.s32.totalorder %s27, 0
      %p96 = por %p94, %p95
      %s98 = sadd.s32 %s97, 1
      %p101 = scmp.eq.s32.totalorder %s21, 1
      %p102 = scmp.ne.s32.totalorder %s97, %s99
      %p103 = scmp.eq.s32.totalorder %s21, 0
      %p104 = por %p102, %p103
      %p105 = scmp.ne.s32.totalorder %s97, %s99
      %p106 = scmp.eq.s32.totalorder %s26, 1
      %p107 = por %p105, %p106
      %p108 = scmp.ne.s32.totalorder %s99, %s100
      %p109 = scmp.eq.s32.totalorder %s26, 0
      %p110 = por %p108, %p109
      %p111 = scmp.ne.s32.totalorder %s99, %s100
      %p112 = scmp.eq.s32.totalorder %s27, 1
      %p113 = por %p111, %p112
      %p115 = scmp.ne.s32.totalorder %s100, %s114
      %p116 = scmp.eq.s32.totalorder %s27, 0
      %p117 = por %p115, %p116
      %s119 = sadd.s32 %s118, 1
      %p122 = scmp.eq.s32.totalorder %s21, 1
      %p123 = scmp.ne.s32.totalorder %s118, %s120
      %p124 = scmp.eq.s32.totalorder %s21, 0
      %p125 = por %p123, %p124
      %p126 = scmp.ne.s32.totalorder %s118, %s120
      %p127 = scmp.eq.s32.totalorder %s26, 1
      %p128 = por %p126, %p127
      %p129 = scmp.ne.s32.totalorder %s120, %s121
      %p130 = scmp.eq.s32.totalorder %s26, 0
      %p131 = por %p129, %p130
      %p132 = scmp.ne.s32.totalorder %s120, %s121
      %p133 = scmp.eq.s32.totalorder %s27, 1
      %p134 = por %p132, %p133
      %p136 = scmp.ne.s32.totalorder %s121, %s135
      %p137 = scmp.eq.s32.totalorder %s27, 0
      %p138 = por %p136, %p137
      %s140 = sadd.s32 %s139, 1
      %p143 = scmp.eq.s32.totalorder %s21, 1
      %p144 = scmp.ne.s32.totalorder %s139, %s141
      %p145 = scmp.eq.s32.totalorder %s21, 0
      %p146 = por %p144, %p145
      %p147 = scmp.ne.s32.totalorder %s139, %s141
      %p148 = scmp.eq.s32.totalorder %s26, 1
      %p149 = por %p147, %p148
      %p150 = scmp.ne.s32.totalorder %s141, %s142
      %p151 = scmp.eq.s32.totalorder %s26, 0
      %p152 = por %p150, %p151
      %p153 = scmp.ne.s32.totalorder %s141, %s142
      %p154 = scmp.eq.s32.totalorder %s27, 1
      %p155 = por %p153, %p154
      %p157 = scmp.ne.s32.totalorder %s142, %s156
      %p158 = scmp.eq.s32.totalorder %s27, 0
      %p159 = por %p157, %p158
      %s161 = sadd.s32 %s160, 1
      %p164 = scmp.eq.s32.totalorder %s21, 1
      %p165 = scmp.ne.s32.totalorder %s160, %s162
      %p166 = scmp.eq.s32.totalorder %s21, 0
      %p167 = por %p165, %p166
      %p168 = scmp.ne.s32.totalorder %s160, %s162
      %p169 = scmp.eq.s32.totalorder %s26, 1
      %p170 = por %p168, %p169
      %p171 = scmp.ne.s32.totalorder %s162, %s163
      %p172 = scmp.eq.s32.totalorder %s26, 0
      %p173 = por %p171, %p172
      %p174 = scmp.ne.s32.totalorder %s162, %s163
      %p175 = scmp.eq.s32.totalorder %s27, 1
      %p176 = por %p174, %p175
      %p178 = scmp.ne.s32.totalorder %s163, %s177
      %p179 = scmp.eq.s32.totalorder %s27, 0
      %p180 = por %p178, %p179
      %s181 = ssub.s32 %s21, %s28
      %p182 = scmp.eq.s32.totalorder %s181, 0
      %s184 = sadd.s32 %s183, 1
      %s185 = scalar_select %p182, %s183, %s184
      %p188 = pneg %p182
      %p189 = scmp.eq.s32.totalorder %s21, 1
      %p190 = por %p188, %p189
      %p191 = scmp.ne.s32.totalorder %s183, %s186
      %p192 = scmp.eq.s32.totalorder %s21, 0
      %p193 = por %p191, %p192
      %p194 = scmp.ne.s32.totalorder %s183, %s186
      %p195 = scmp.eq.s32.totalorder %s26, 1
      %p196 = por %p194, %p195
      %p197 = scmp.ne.s32.totalorder %s186, %s187
      %p198 = scmp.eq.s32.totalorder %s26, 0
      %p199 = por %p197, %p198
      %p200 = scmp.ne.s32.totalorder %s186, %s187
      %p201 = scmp.eq.s32.totalorder %s27, 1
      %p202 = por %p200, %p201
      %p204 = scmp.ne.s32.totalorder %s187, %s203
      %p205 = scmp.eq.s32.totalorder %s27, 0
      %p206 = por %p204, %p205
      %p207 = scmp.le.s32.totalorder 1, %s21
      %p208 = scmp.lt.s32.totalorder %s21, 3
      %p209 = pnand %p207, %p208
      %p210 = pneg %p209
      // Predicated region
      $region9: #{tpu_custom_call.1} parent=5 // pred_check
        _
      $region10: #{tpu_custom_call.1} parent=5 // pred_check_branch
        %212 = sbr.rel (%p209) target = $region12
      $region11: #{tpu_custom_call.1} parent=5 // pred_region
        %s213 = ssub.s32 %s21, 1
        // Predicated region
        $region13: #{tpu_custom_call.1} parent=11 // pred_check
          %p214 = pneg %p68
        $region14: #{tpu_custom_call.1} parent=11 // pred_check_branch
          %216 = sbr.rel (%p214) target = $region16
        $region15: #{tpu_custom_call.1} parent=11 // pred_region
          %218 = vsyncadd [#allocation6], 0
          %s219 = sshll.u32 %s1, 4
          %s220 = int_to_ptr.hbm [resolvable:$true] %s219
          %s221 = sshll.u32 [#allocation5], 4
          %s222 = int_to_ptr.vmem [resolvable:$true] %s221
          %227 = dma.hbm_to_vmem [thread:$0]  %s220, 1024, %s222, [#allocation6], 64, 64, 4
        $region16: #{tpu_custom_call.1} parent=11 // pred_fallthru
          _
        // Predicated region
        $region17: #{tpu_custom_call.1} parent=11 // pred_check
          %p228 = pneg %p89
        $region18: #{tpu_custom_call.1} parent=11 // pred_check_branch
          %230 = sbr.rel (%p228) target = $region20
        $region19: #{tpu_custom_call.1} parent=11 // pred_region
          _
        $region20: #{tpu_custom_call.1} parent=11 // pred_fallthru
          _
        // Predicated region
        $region21: #{tpu_custom_call.1} parent=11 // pred_check
          %p231 = pneg %p110
        $region22: #{tpu_custom_call.1} parent=11 // pred_check_branch
          %233 = sbr.rel (%p231) target = $region24
        $region23: #{tpu_custom_call.1} parent=11 // pred_region
          %235 = vsyncadd [#allocation6], 0
          %s236 = sshll.u32 %s3, 4
          %s237 = int_to_ptr.hbm [resolvable:$true] %s236
          %s238 = sshll.u32 [#allocation7], 4
          %s239 = int_to_ptr.vmem [resolvable:$true] %s238
          %244 = dma.hbm_to_vmem [thread:$0]  %s237, 1024, %s239, [#allocation6], 64, 64, 4
        $region24: #{tpu_custom_call.1} parent=11 // pred_fallthru
          _
        // Predicated region
        $region25: #{tpu_custom_call.1} parent=11 // pred_check
          %p245 = pneg %p131
        $region26: #{tpu_custom_call.1} parent=11 // pred_check_branch
          %247 = sbr.rel (%p245) target = $region28
        $region27: #{tpu_custom_call.1} parent=11 // pred_region
          %249 = vsyncadd [#allocation9], 0
          %s251 = sshll.u32 %s4, 4
          %s252 = int_to_ptr.hbm [resolvable:$true] %s251
          %s253 = sshll.u32 [#allocation8], 4
          %s254 = int_to_ptr.vmem [resolvable:$true] %s253
          %256 = dma.hbm_to_vmem [thread:$0]  %s252, 16, %s254, [#allocation9]
        $region28: #{tpu_custom_call.1} parent=11 // pred_fallthru
          _
        // Predicated region
        $region29: #{tpu_custom_call.1} parent=11 // pred_check
          %p257 = pneg %p152
        $region30: #{tpu_custom_call.1} parent=11 // pred_check_branch
          %259 = sbr.rel (%p257) target = $region32
        $region31: #{tpu_custom_call.1} parent=11 // pred_region
          %261 = vsyncadd [#allocation9], 0
          %s262 = sshll.u32 %s5, 4
          %s263 = int_to_ptr.hbm [resolvable:$true] %s262
          %s264 = sshll.u32 [#allocation10], 4
          %s265 = int_to_ptr.vmem [resolvable:$true] %s264
          %270 = dma.hbm_to_vmem [thread:$0]  %s263, 2048, %s265, [#allocation9], 128, 128, 8
        $region32: #{tpu_custom_call.1} parent=11 // pred_fallthru
          _
        // Predicated region
        $region33: #{tpu_custom_call.1} parent=11 // pred_check
          %p271 = pneg %p173
        $region34: #{tpu_custom_call.1} parent=11 // pred_check_branch
          %273 = sbr.rel (%p271) target = $region36
        $region35: #{tpu_custom_call.1} parent=11 // pred_region
          _
        $region36: #{tpu_custom_call.1} parent=11 // pred_fallthru
          _
      $region12: #{tpu_custom_call.1} parent=5 // pred_fallthru
        _
      %p274 = scmp.lt.s32.totalorder %s21, 2
      // Predicated region
      $region37: #{tpu_custom_call.1} parent=5 // pred_check
        %p275 = pneg %p274
      $region38: #{tpu_custom_call.1} parent=5 // pred_check_branch
        %277 = sbr.rel (%p275) target = $region40
      $region39: #{tpu_custom_call.1} parent=5 // pred_region
        // Predicated region
        $region41: #{tpu_custom_call.1} parent=39 // pred_check
          %p278 = pneg %p41
        $region42: #{tpu_custom_call.1} parent=39 // pred_check_branch
          %280 = sbr.rel (%p278) target = $region44
        $region43: #{tpu_custom_call.1} parent=39 // pred_region
          %s281 = sand.u32 %s31, 1
          %s282 = scalar_lea.sflag [#allocation3], %s281
          %s283 = sand.u32 %s31, 1
          %s284 = smul.addr %s283, 64
          %s285 = scalar_lea.vmem [#allocation2], %s284
          %s286 = smul.u32 16, %s21
          %288 = vsyncadd %s282, 0
          %s289 = smul.addr %s286, 4
          %s290 = scalar_lea.hbm %s0, %s289
          %s291 = sshll.u32 %s290, 4
          %s292 = int_to_ptr.hbm [resolvable:$true] %s291
          %s293 = sshll.u32 %s285, 4
          %s294 = int_to_ptr.vmem [resolvable:$true] %s293
          %299 = dma.hbm_to_vmem [thread:$0]  %s292, 1024, %s294, %s282, 64, 64, 4
        $region44: #{tpu_custom_call.1} parent=39 // pred_fallthru
          _
      $region40: #{tpu_custom_call.1} parent=5 // pred_fallthru
        _
      %p300 = scmp.le.s32.totalorder 1, %s21
      %p301 = scmp.lt.s32.totalorder %s21, 3
      %p302 = pnand %p300, %p301
      %p303 = pneg %p302
      // Predicated region
      $region45: #{tpu_custom_call.1} parent=5 // pred_check
        _
      $region46: #{tpu_custom_call.1} parent=5 // pred_check_branch
        %305 = sbr.rel (%p302) target = $region48
      $region47: #{tpu_custom_call.1} parent=5 // pred_region
        %s306 = ssub.s32 %s21, 1
        %s307 = sand.u32 %s34, 1
        %s308 = scalar_lea.sflag [#allocation3], %s307
        %s309 = sand.u32 %s34, 1
        %s310 = smul.addr %s309, 64
        %s311 = scalar_lea.vmem [#allocation2], %s310
        // Predicated region
        $region49: #{tpu_custom_call.1} parent=47 // pred_check
          %p312 = pneg %p47
        $region50: #{tpu_custom_call.1} parent=47 // pred_check_branch
          %314 = sbr.rel (%p312) target = $region52
        $region51: #{tpu_custom_call.1} parent=47 // pred_region
          %316 = dma.done %s308, 1024
        $region52: #{tpu_custom_call.1} parent=47 // pred_fallthru
          _
        // Predicated region
        $region53: #{tpu_custom_call.1} parent=47 // pred_check
          %p317 = pneg %p68
        $region54: #{tpu_custom_call.1} parent=47 // pred_check_branch
          %319 = sbr.rel (%p317) target = $region56
        $region55: #{tpu_custom_call.1} parent=47 // pred_region
          %321 = dma.done [#allocation6], 1024
        $region56: #{tpu_custom_call.1} parent=47 // pred_fallthru
          _
        // Predicated region
        $region57: #{tpu_custom_call.1} parent=47 // pred_check
          %p322 = pneg %p110
        $region58: #{tpu_custom_call.1} parent=47 // pred_check_branch
          %324 = sbr.rel (%p322) target = $region60
        $region59: #{tpu_custom_call.1} parent=47 // pred_region
          %326 = dma.done [#allocation6], 1024
        $region60: #{tpu_custom_call.1} parent=47 // pred_fallthru
          _
        // Predicated region
        $region61: #{tpu_custom_call.1} parent=47 // pred_check
          %p327 = pneg %p131
        $region62: #{tpu_custom_call.1} parent=47 // pred_check_branch
          %329 = sbr.rel (%p327) target = $region64
        $region63: #{tpu_custom_call.1} parent=47 // pred_region
          %331 = dma.done [#allocation9], 16
        $region64: #{tpu_custom_call.1} parent=47 // pred_fallthru
          _
        // Predicated region
        $region65: #{tpu_custom_call.1} parent=47 // pred_check
          %p332 = pneg %p152
        $region66: #{tpu_custom_call.1} parent=47 // pred_check_branch
          %334 = sbr.rel (%p332) target = $region68
        $region67: #{tpu_custom_call.1} parent=47 // pred_region
          %336 = dma.done [#allocation9], 2048
        $region68: #{tpu_custom_call.1} parent=47 // pred_fallthru
          _
        %s337 = sand.u32 %s34, 1
        %s338 = scalar_lea.sflag [#allocation3], %s337
        %s339 = sand.u32 %s34, 1
        %s340 = smul.addr %s339, 64
        %s341 = scalar_lea.vmem [#allocation2], %s340
        %p342 = pneg %p47
        %p343 = pneg %p44
        %p344 = pneg %p68
        %p345 = pneg %p65
        %p346 = pneg %p89
        %p347 = pneg %p86
        %p348 = pneg %p110
        %p349 = pneg %p107
        %p350 = pneg %p131
        %p351 = pneg %p128
        %p352 = pneg %p152
        %p353 = pneg %p149
        %p354 = pneg %p173
        %p355 = pneg %p170
        %p356 = pneg %p199
        %p357 = pneg %p196
        %s358 = sand.u32 %s186, 1
        %s359 = scalar_lea.sflag [#allocation4], %s358
        %s360 = sand.u32 %s186, 1
        %s361 = smul.addr %s360, 256
        %s362 = scalar_lea.vmem [#allocation11], %s361
        %s363 = smul.u32 16, %s26
        %s364 = smul.u32 16, %s26
        %v365 = vld [vmem:[%s311] sm:$0xf]
        %v366 = vld [vmem:[%s311 + $0x4] sm:$0xf]
        %v367 = vld [vmem:[%s311 + $0x8] sm:$0xf]
        %v368 = vld [vmem:[%s311 + $0xc] sm:$0xf]
        %v369 = vld [vmem:[%s311 + $0x10] sm:$0xf]
        %v370 = vld [vmem:[%s311 + $0x14] sm:$0xf]
        %v371 = vld [vmem:[%s311 + $0x18] sm:$0xf]
        %v372 = vld [vmem:[%s311 + $0x1c] sm:$0xf]
        %v373 = vld [vmem:[%s311 + $0x20] sm:$0xf]
        %v374 = vld [vmem:[%s311 + $0x24] sm:$0xf]
        %v375 = vld [vmem:[%s311 + $0x28] sm:$0xf]
        %v376 = vld [vmem:[%s311 + $0x2c] sm:$0xf]
        %v377 = vld [vmem:[%s311 + $0x30] sm:$0xf]
        %v378 = vld [vmem:[%s311 + $0x34] sm:$0xf]
        %v379 = vld [vmem:[%s311 + $0x38] sm:$0xf]
        %v380 = vld [vmem:[%s311 + $0x3c] sm:$0xf]
        %v381 = vld [vmem:[#allocation5] sm:$0xf]
        %v382 = vld [vmem:[#allocation5 + $0x4] sm:$0xf]
        %v383 = vld [vmem:[#allocation5 + $0x8] sm:$0xf]
        %v384 = vld [vmem:[#allocation5 + $0xc] sm:$0xf]
        %v385 = vld [vmem:[#allocation5 + $0x10] sm:$0xf]
        %v386 = vld [vmem:[#allocation5 + $0x14] sm:$0xf]
        %v387 = vld [vmem:[#allocation5 + $0x18] sm:$0xf]
        %v388 = vld [vmem:[#allocation5 + $0x1c] sm:$0xf]
        %v389 = vld [vmem:[#allocation5 + $0x20] sm:$0xf]
        %v390 = vld [vmem:[#allocation5 + $0x24] sm:$0xf]
        %v391 = vld [vmem:[#allocation5 + $0x28] sm:$0xf]
        %v392 = vld [vmem:[#allocation5 + $0x2c] sm:$0xf]
        %v393 = vld [vmem:[#allocation5 + $0x30] sm:$0xf]
        %v394 = vld [vmem:[#allocation5 + $0x34] sm:$0xf]
        %v395 = vld [vmem:[#allocation5 + $0x38] sm:$0xf]
        %v396 = vld [vmem:[#allocation5 + $0x3c] sm:$0xf]
        %v397 = vld [vmem:[%s2] sm:$0x1]
        %v399 = vperm.slane %v397, 0
        %v417 = vunpack.c.l.b16 %v365
        %v418 = vunpack.c.l.b16 %v366
        %v419 = vunpack.c.l.b16 %v367
        %v420 = vunpack.c.l.b16 %v368
        %v421 = vunpack.c.l.b16 %v369
        %v422 = vunpack.c.l.b16 %v370
        %v423 = vunpack.c.l.b16 %v371
        %v424 = vunpack.c.l.b16 %v372
        %v425 = vunpack.c.l.b16 %v373
        %v426 = vunpack.c.l.b16 %v374
        %v427 = vunpack.c.l.b16 %v375
        %v428 = vunpack.c.l.b16 %v376
        %v429 = vunpack.c.l.b16 %v377
        %v430 = vunpack.c.l.b16 %v378
        %v431 = vunpack.c.l.b16 %v379
        %v432 = vunpack.c.l.b16 %v380
        %v433 = vpack.c.b16 %v418, %v417
        %v434 = vpack.c.b16 %v420, %v419
        %v435 = vpack.c.b16 %v422, %v421
        %v436 = vpack.c.b16 %v424, %v423
        %v437 = vpack.c.b16 %v426, %v425
        %v438 = vpack.c.b16 %v428, %v427
        %v439 = vpack.c.b16 %v430, %v429
        %v440 = vpack.c.b16 %v432, %v431
        %v465 = vunpack.c.l.b16 %v381
        %v466 = vunpack.c.l.b16 %v382
        %v467 = vunpack.c.l.b16 %v383
        %v468 = vunpack.c.l.b16 %v384
        %v469 = vunpack.c.l.b16 %v385
        %v470 = vunpack.c.l.b16 %v386
        %v471 = vunpack.c.l.b16 %v387
        %v472 = vunpack.c.l.b16 %v388
        %v473 = vunpack.c.l.b16 %v389
        %v474 = vunpack.c.l.b16 %v390
        %v475 = vunpack.c.l.b16 %v391
        %v476 = vunpack.c.l.b16 %v392
        %v477 = vunpack.c.l.b16 %v393
        %v478 = vunpack.c.l.b16 %v394
        %v479 = vunpack.c.l.b16 %v395
        %v480 = vunpack.c.l.b16 %v396
        %v481 = vpack.c.b16 %v466, %v465
        %v482 = vpack.c.b16 %v468, %v467
        %v483 = vpack.c.b16 %v470, %v469
        %v484 = vpack.c.b16 %v472, %v471
        %v485 = vpack.c.b16 %v474, %v473
        %v486 = vpack.c.b16 %v476, %v475
        %v487 = vpack.c.b16 %v478, %v477
        %v488 = vpack.c.b16 %v480, %v479
        %497 = vmatpush.bf16.msra.mxu0 %v488
        %498 = vmatpush.bf16.msra.mxu0 %v487
        %499 = vmatpush.bf16.msra.mxu0 %v486
        %500 = vmatpush.bf16.msra.mxu0 %v485
        %501 = vmatpush.bf16.msra.mxu0 %v484
        %502 = vmatpush.bf16.msra.mxu0 %v483
        %503 = vmatpush.bf16.msra.mxu0 %v482
        %504 = vmatpush.bf16.msra.mxu0 %v481
        %505 = vmatmul.bf16.gmra.mxu0 %v433
        %v506 = vpop.f32.mrf.mxu0
        %v507 = vadd.f32 %v399, %v506
        %v508 = vpop.f32.mrf.mxu0
        %v509 = vadd.f32 %v399, %v508
        %510 = vmatmul.bf16.gmra.mxu0 %v434
        %v511 = vpop.f32.mrf.mxu0
        %v512 = vadd.f32 %v399, %v511
        %v513 = vpop.f32.mrf.mxu0
        %v514 = vadd.f32 %v399, %v513
        %515 = vmatmul.bf16.gmra.mxu0 %v435
        %v516 = vpop.f32.mrf.mxu0
        %v517 = vadd.f32 %v399, %v516
        %v518 = vpop.f32.mrf.mxu0
        %v519 = vadd.f32 %v399, %v518
        %520 = vmatmul.bf16.gmra.mxu0 %v436
        %v521 = vpop.f32.mrf.mxu0
        %v522 = vadd.f32 %v399, %v521
        %v523 = vpop.f32.mrf.mxu0
        %v524 = vadd.f32 %v399, %v523
        %525 = vmatmul.bf16.gmra.mxu0 %v437
        %v526 = vpop.f32.mrf.mxu0
        %v527 = vadd.f32 %v399, %v526
        %v528 = vpop.f32.mrf.mxu0
        %v529 = vadd.f32 %v399, %v528
        %530 = vmatmul.bf16.gmra.mxu0 %v438
        %v531 = vpop.f32.mrf.mxu0
        %v532 = vadd.f32 %v399, %v531
        %v533 = vpop.f32.mrf.mxu0
        %v534 = vadd.f32 %v399, %v533
        %535 = vmatmul.bf16.gmra.mxu0 %v439
        %v536 = vpop.f32.mrf.mxu0
        %v537 = vadd.f32 %v399, %v536
        %v538 = vpop.f32.mrf.mxu0
        %v539 = vadd.f32 %v399, %v538
        %540 = vmatmul.bf16.gmra.mxu0 %v440
        %v541 = vpop.f32.mrf.mxu0
        %v542 = vadd.f32 %v399, %v541
        %v543 = vpop.f32.mrf.mxu0
        %v544 = vadd.f32 %v399, %v543
        %545 = vdwg.mxu0
        %v546 = vmax.f32 %v507, 0.0
        %v547 = vmax.f32 %v509, 0.0
        %v548 = vmax.f32 %v512, 0.0
        %v549 = vmax.f32 %v514, 0.0
        %v550 = vmax.f32 %v517, 0.0
        %v551 = vmax.f32 %v519, 0.0
        %v552 = vmax.f32 %v522, 0.0
        %v553 = vmax.f32 %v524, 0.0
        %v554 = vmax.f32 %v527, 0.0
        %v555 = vmax.f32 %v529, 0.0
        %v556 = vmax.f32 %v532, 0.0
        %v557 = vmax.f32 %v534, 0.0
        %v558 = vmax.f32 %v537, 0.0
        %v559 = vmax.f32 %v539, 0.0
        %v560 = vmax.f32 %v542, 0.0
        %v561 = vmax.f32 %v544, 0.0
        %v562 = vpack.c.bf16 %v547, %v546
        %v563 = vpack.c.bf16 %v549, %v548
        %v564 = vpack.c.bf16 %v551, %v550
        %v565 = vpack.c.bf16 %v553, %v552
        %v566 = vpack.c.bf16 %v555, %v554
        %v567 = vpack.c.bf16 %v557, %v556
        %v568 = vpack.c.bf16 %v559, %v558
        %v569 = vpack.c.bf16 %v561, %v560
        %v570 = vld [vmem:[#allocation7] sm:$0xf]
        %v571 = vld [vmem:[#allocation7 + $0x4] sm:$0xf]
        %v572 = vld [vmem:[#allocation7 + $0x8] sm:$0xf]
        %v573 = vld [vmem:[#allocation7 + $0xc] sm:$0xf]
        %v574 = vld [vmem:[#allocation7 + $0x10] sm:$0xf]
        %v575 = vld [vmem:[#allocation7 + $0x14] sm:$0xf]
        %v576 = vld [vmem:[#allocation7 + $0x18] sm:$0xf]
        %v577 = vld [vmem:[#allocation7 + $0x1c] sm:$0xf]
        %v578 = vld [vmem:[#allocation7 + $0x20] sm:$0xf]
        %v579 = vld [vmem:[#allocation7 + $0x24] sm:$0xf]
        %v580 = vld [vmem:[#allocation7 + $0x28] sm:$0xf]
        %v581 = vld [vmem:[#allocation7 + $0x2c] sm:$0xf]
        %v582 = vld [vmem:[#allocation7 + $0x30] sm:$0xf]
        %v583 = vld [vmem:[#allocation7 + $0x34] sm:$0xf]
        %v584 = vld [vmem:[#allocation7 + $0x38] sm:$0xf]
        %v585 = vld [vmem:[#allocation7 + $0x3c] sm:$0xf]
        %v586 = vld [vmem:[#allocation8] sm:$0x1]
        %v588 = vperm.slane %v586, 0
        %v606 = vunpack.c.l.b16 %v570
        %v607 = vunpack.c.l.b16 %v571
        %v608 = vunpack.c.l.b16 %v572
        %v609 = vunpack.c.l.b16 %v573
        %v610 = vunpack.c.l.b16 %v574
        %v611 = vunpack.c.l.b16 %v575
        %v612 = vunpack.c.l.b16 %v576
        %v613 = vunpack.c.l.b16 %v577
        %v614 = vunpack.c.l.b16 %v578
        %v615 = vunpack.c.l.b16 %v579
        %v616 = vunpack.c.l.b16 %v580
        %v617 = vunpack.c.l.b16 %v581
        %v618 = vunpack.c.l.b16 %v582
        %v619 = vunpack.c.l.b16 %v583
        %v620 = vunpack.c.l.b16 %v584
        %v621 = vunpack.c.l.b16 %v585
        %v622 = vpack.c.b16 %v607, %v606
        %v623 = vpack.c.b16 %v609, %v608
        %v624 = vpack.c.b16 %v611, %v610
        %v625 = vpack.c.b16 %v613, %v612
        %v626 = vpack.c.b16 %v615, %v614
        %v627 = vpack.c.b16 %v617, %v616
        %v628 = vpack.c.b16 %v619, %v618
        %v629 = vpack.c.b16 %v621, %v620
        %638 = vmatpush.bf16.msra.mxu0 %v629
        %639 = vmatpush.bf16.msra.mxu0 %v628
        %640 = vmatpush.bf16.msra.mxu0 %v627
        %641 = vmatpush.bf16.msra.mxu0 %v626
        %642 = vmatpush.bf16.msra.mxu0 %v625
        %643 = vmatpush.bf16.msra.mxu0 %v624
        %644 = vmatpush.bf16.msra.mxu0 %v623
        %645 = vmatpush.bf16.msra.mxu0 %v622
        %646 = vmatmul.bf16.gmra.mxu0 %v562
        %v647 = vpop.f32.mrf.mxu0
        %v648 = vadd.f32 %v588, %v647
        %v649 = vpop.f32.mrf.mxu0
        %v650 = vadd.f32 %v588, %v649
        %651 = vmatmul.bf16.gmra.mxu0 %v563
        %v652 = vpop.f32.mrf.mxu0
        %v653 = vadd.f32 %v588, %v652
        %v654 = vpop.f32.mrf.mxu0
        %v655 = vadd.f32 %v588, %v654
        %656 = vmatmul.bf16.gmra.mxu0 %v564
        %v657 = vpop.f32.mrf.mxu0
        %v658 = vadd.f32 %v588, %v657
        %v659 = vpop.f32.mrf.mxu0
        %v660 = vadd.f32 %v588, %v659
        %661 = vmatmul.bf16.gmra.mxu0 %v565
        %v662 = vpop.f32.mrf.mxu0
        %v663 = vadd.f32 %v588, %v662
        %v664 = vpop.f32.mrf.mxu0
        %v665 = vadd.f32 %v588, %v664
        %666 = vmatmul.bf16.gmra.mxu0 %v566
        %v667 = vpop.f32.mrf.mxu0
        %v668 = vadd.f32 %v588, %v667
        %v669 = vpop.f32.mrf.mxu0
        %v670 = vadd.f32 %v588, %v669
        %671 = vmatmul.bf16.gmra.mxu0 %v567
        %v672 = vpop.f32.mrf.mxu0
        %v673 = vadd.f32 %v588, %v672
        %v674 = vpop.f32.mrf.mxu0
        %v675 = vadd.f32 %v588, %v674
        %676 = vmatmul.bf16.gmra.mxu0 %v568
        %v677 = vpop.f32.mrf.mxu0
        %v678 = vadd.f32 %v588, %v677
        %v679 = vpop.f32.mrf.mxu0
        %v680 = vadd.f32 %v588, %v679
        %681 = vmatmul.bf16.gmra.mxu0 %v569
        %v682 = vpop.f32.mrf.mxu0
        %v683 = vadd.f32 %v588, %v682
        %v684 = vpop.f32.mrf.mxu0
        %v685 = vadd.f32 %v588, %v684
        %686 = vdwg.mxu0
        %v687 = vmax.f32 %v648, 0.0
        %v688 = vmax.f32 %v650, 0.0
        %v689 = vmax.f32 %v653, 0.0
        %v690 = vmax.f32 %v655, 0.0
        %v691 = vmax.f32 %v658, 0.0
        %v692 = vmax.f32 %v660, 0.0
        %v693 = vmax.f32 %v663, 0.0
        %v694 = vmax.f32 %v665, 0.0
        %v695 = vmax.f32 %v668, 0.0
        %v696 = vmax.f32 %v670, 0.0
        %v697 = vmax.f32 %v673, 0.0
        %v698 = vmax.f32 %v675, 0.0
        %v699 = vmax.f32 %v678, 0.0
        %v700 = vmax.f32 %v680, 0.0
        %v701 = vmax.f32 %v683, 0.0
        %v702 = vmax.f32 %v685, 0.0
        %v703 = vpack.c.bf16 %v688, %v687
        %v704 = vpack.c.bf16 %v690, %v689
        %v705 = vpack.c.bf16 %v692, %v691
        %v706 = vpack.c.bf16 %v694, %v693
        %v707 = vpack.c.bf16 %v696, %v695
        %v708 = vpack.c.bf16 %v698, %v697
        %v709 = vpack.c.bf16 %v700, %v699
        %v710 = vpack.c.bf16 %v702, %v701
        %v711 = vld [vmem:[#allocation10] sm:$0xff]
        %v712 = vld [vmem:[#allocation10 + $0x8] sm:$0xff]
        %v713 = vld [vmem:[#allocation10 + $0x10] sm:$0xff]
        %v714 = vld [vmem:[#allocation10 + $0x18] sm:$0xff]
        %v715 = vld [vmem:[#allocation10 + $0x20] sm:$0xff]
        %v716 = vld [vmem:[#allocation10 + $0x28] sm:$0xff]
        %v717 = vld [vmem:[#allocation10 + $0x30] sm:$0xff]
        %v718 = vld [vmem:[#allocation10 + $0x38] sm:$0xff]
        %v719 = vld [vmem:[#allocation10 + $0x40] sm:$0xff]
        %v720 = vld [vmem:[#allocation10 + $0x48] sm:$0xff]
        %v721 = vld [vmem:[#allocation10 + $0x50] sm:$0xff]
        %v722 = vld [vmem:[#allocation10 + $0x58] sm:$0xff]
        %v723 = vld [vmem:[#allocation10 + $0x60] sm:$0xff]
        %v724 = vld [vmem:[#allocation10 + $0x68] sm:$0xff]
        %v725 = vld [vmem:[#allocation10 + $0x70] sm:$0xff]
        %v726 = vld [vmem:[#allocation10 + $0x78] sm:$0xff]
        %v727 = vld [vmem:[%s6] sm:$0x3]
        %v729 = vperm.slane %v727, 0
        %v730 = vperm.slane %v727, 1
        %v749 = vunpack.c.l.b16 %v711
        %v750 = vunpack.c.h.b16 %v711
        %v751 = vunpack.c.l.b16 %v712
        %v752 = vunpack.c.h.b16 %v712
        %v753 = vunpack.c.l.b16 %v713
        %v754 = vunpack.c.h.b16 %v713
        %v755 = vunpack.c.l.b16 %v714
        %v756 = vunpack.c.h.b16 %v714
        %v757 = vunpack.c.l.b16 %v715
        %v758 = vunpack.c.h.b16 %v715
        %v759 = vunpack.c.l.b16 %v716
        %v760 = vunpack.c.h.b16 %v716
        %v761 = vunpack.c.l.b16 %v717
        %v762 = vunpack.c.h.b16 %v717
        %v763 = vunpack.c.l.b16 %v718
        %v764 = vunpack.c.h.b16 %v718
        %v765 = vunpack.c.l.b16 %v719
        %v766 = vunpack.c.h.b16 %v719
        %v767 = vunpack.c.l.b16 %v720
        %v768 = vunpack.c.h.b16 %v720
        %v769 = vunpack.c.l.b16 %v721
        %v770 = vunpack.c.h.b16 %v721
        %v771 = vunpack.c.l.b16 %v722
        %v772 = vunpack.c.h.b16 %v722
        %v773 = vunpack.c.l.b16 %v723
        %v774 = vunpack.c.h.b16 %v723
        %v775 = vunpack.c.l.b16 %v724
        %v776 = vunpack.c.h.b16 %v724
        %v777 = vunpack.c.l.b16 %v725
        %v778 = vunpack.c.h.b16 %v725
        %v779 = vunpack.c.l.b16 %v726
        %v780 = vunpack.c.h.b16 %v726
        %v781 = vpack.c.b16 %v751, %v749
        %v782 = vpack.c.b16 %v752, %v750
        %v783 = vpack.c.b16 %v755, %v753
        %v784 = vpack.c.b16 %v756, %v754
        %v785 = vpack.c.b16 %v759, %v757
        %v786 = vpack.c.b16 %v760, %v758
        %v787 = vpack.c.b16 %v763, %v761
        %v788 = vpack.c.b16 %v764, %v762
        %v789 = vpack.c.b16 %v767, %v765
        %v790 = vpack.c.b16 %v768, %v766
        %v791 = vpack.c.b16 %v771, %v769
        %v792 = vpack.c.b16 %v772, %v770
        %v793 = vpack.c.b16 %v775, %v773
        %v794 = vpack.c.b16 %v776, %v774
        %v795 = vpack.c.b16 %v779, %v777
        %v796 = vpack.c.b16 %v780, %v778
        %813 = vmatpush.bf16.msra.mxu0 %v795
        %814 = vmatpush.bf16.msra.mxu0 %v793
        %815 = vmatpush.bf16.msra.mxu0 %v791
        %816 = vmatpush.bf16.msra.mxu0 %v789
        %817 = vmatpush.bf16.msra.mxu0 %v787
        %818 = vmatpush.bf16.msra.mxu0 %v785
        %819 = vmatpush.bf16.msra.mxu0 %v783
        %820 = vmatpush.bf16.msra.mxu0 %v781
        %821 = vmatmul.bf16.gmra.mxu0 %v703
        %v822 = vpop.f32.mrf.mxu0
        %v823 = vadd.f32 %v729, %v822
        %v824 = vpop.f32.mrf.mxu0
        %v825 = vadd.f32 %v729, %v824
        %826 = vmatmul.bf16.gmra.mxu0 %v704
        %v827 = vpop.f32.mrf.mxu0
        %v828 = vadd.f32 %v729, %v827
        %v829 = vpop.f32.mrf.mxu0
        %v830 = vadd.f32 %v729, %v829
        %831 = vmatmul.bf16.gmra.mxu0 %v705
        %v832 = vpop.f32.mrf.mxu0
        %v833 = vadd.f32 %v729, %v832
        %v834 = vpop.f32.mrf.mxu0
        %v835 = vadd.f32 %v729, %v834
        %836 = vmatmul.bf16.gmra.mxu0 %v706
        %v837 = vpop.f32.mrf.mxu0
        %v838 = vadd.f32 %v729, %v837
        %v839 = vpop.f32.mrf.mxu0
        %v840 = vadd.f32 %v729, %v839
        %841 = vmatmul.bf16.gmra.mxu0 %v707
        %v842 = vpop.f32.mrf.mxu0
        %v843 = vadd.f32 %v729, %v842
        %v844 = vpop.f32.mrf.mxu0
        %v845 = vadd.f32 %v729, %v844
        %846 = vmatmul.bf16.gmra.mxu0 %v708
        %v847 = vpop.f32.mrf.mxu0
        %v848 = vadd.f32 %v729, %v847
        %v849 = vpop.f32.mrf.mxu0
        %v850 = vadd.f32 %v729, %v849
        %851 = vmatmul.bf16.gmra.mxu0 %v709
        %v852 = vpop.f32.mrf.mxu0
        %v853 = vadd.f32 %v729, %v852
        %v854 = vpop.f32.mrf.mxu0
        %v855 = vadd.f32 %v729, %v854
        %856 = vmatmul.bf16.gmra.mxu0 %v710
        %v857 = vpop.f32.mrf.mxu0
        %v858 = vadd.f32 %v729, %v857
        %v859 = vpop.f32.mrf.mxu0
        %v860 = vadd.f32 %v729, %v859
        %861 = vdwg.mxu0
        %862 = vmatpush.bf16.msra.mxu0 %v796
        %863 = vmatpush.bf16.msra.mxu0 %v794
        %864 = vmatpush.bf16.msra.mxu0 %v792
        %865 = vmatpush.bf16.msra.mxu0 %v790
        %866 = vmatpush.bf16.msra.mxu0 %v788
        %867 = vmatpush.bf16.msra.mxu0 %v786
        %868 = vmatpush.bf16.msra.mxu0 %v784
        %869 = vmatpush.bf16.msra.mxu0 %v782
        %870 = vmatmul.bf16.gmra.mxu0 %v703
        %v871 = vpop.f32.mrf.mxu0
        %v872 = vadd.f32 %v730, %v871
        %v873 = vpop.f32.mrf.mxu0
        %v874 = vadd.f32 %v730, %v873
        %875 = vmatmul.bf16.gmra.mxu0 %v704
        %v876 = vpop.f32.mrf.mxu0
        %v877 = vadd.f32 %v730, %v876
        %v878 = vpop.f32.mrf.mxu0
        %v879 = vadd.f32 %v730, %v878
        %880 = vmatmul.bf16.gmra.mxu0 %v705
        %v881 = vpop.f32.mrf.mxu0
        %v882 = vadd.f32 %v730, %v881
        %v883 = vpop.f32.mrf.mxu0
        %v884 = vadd.f32 %v730, %v883
        %885 = vmatmul.bf16.gmra.mxu0 %v706
        %v886 = vpop.f32.mrf.mxu0
        %v887 = vadd.f32 %v730, %v886
        %v888 = vpop.f32.mrf.mxu0
        %v889 = vadd.f32 %v730, %v888
        %890 = vmatmul.bf16.gmra.mxu0 %v707
        %v891 = vpop.f32.mrf.mxu0
        %v892 = vadd.f32 %v730, %v891
        %v893 = vpop.f32.mrf.mxu0
        %v894 = vadd.f32 %v730, %v893
        %895 = vmatmul.bf16.gmra.mxu0 %v708
        %v896 = vpop.f32.mrf.mxu0
        %v897 = vadd.f32 %v730, %v896
        %v898 = vpop.f32.mrf.mxu0
        %v899 = vadd.f32 %v730, %v898
        %900 = vmatmul.bf16.gmra.mxu0 %v709
        %v901 = vpop.f32.mrf.mxu0
        %v902 = vadd.f32 %v730, %v901
        %v903 = vpop.f32.mrf.mxu0
        %v904 = vadd.f32 %v730, %v903
        %905 = vmatmul.bf16.gmra.mxu0 %v710
        %v906 = vpop.f32.mrf.mxu0
        %v907 = vadd.f32 %v730, %v906
        %v908 = vpop.f32.mrf.mxu0
        %v909 = vadd.f32 %v730, %v908
        %910 = vdwg.mxu0
        %v911 = vmul.f32 %v823, 1.442695
        %v912 = vpow.pop %v911
        %v913 = vmul.f32 %v872, 1.442695
        %v914 = vpow.pop %v913
        %v915 = vmul.f32 %v825, 1.442695
        %v916 = vpow.pop %v915
        %v917 = vmul.f32 %v874, 1.442695
        %v918 = vpow.pop %v917
        %v919 = vmul.f32 %v828, 1.442695
        %v920 = vpow.pop %v919
        %v921 = vmul.f32 %v877, 1.442695
        %v922 = vpow.pop %v921
        %v923 = vmul.f32 %v830, 1.442695
        %v924 = vpow.pop %v923
        %v925 = vmul.f32 %v879, 1.442695
        %v926 = vpow.pop %v925
        %v927 = vmul.f32 %v833, 1.442695
        %v928 = vpow.pop %v927
        %v929 = vmul.f32 %v882, 1.442695
        %v930 = vpow.pop %v929
        %v931 = vmul.f32 %v835, 1.442695
        %v932 = vpow.pop %v931
        %v933 = vmul.f32 %v884, 1.442695
        %v934 = vpow.pop %v933
        %v935 = vmul.f32 %v838, 1.442695
        %v936 = vpow.pop %v935
        %v937 = vmul.f32 %v887, 1.442695
        %v938 = vpow.pop %v937
        %v939 = vmul.f32 %v840, 1.442695
        %v940 = vpow.pop %v939
        %v941 = vmul.f32 %v889, 1.442695
        %v942 = vpow.pop %v941
        %v943 = vmul.f32 %v843, 1.442695
        %v944 = vpow.pop %v943
        %v945 = vmul.f32 %v892, 1.442695
        %v946 = vpow.pop %v945
        %v947 = vmul.f32 %v845, 1.442695
        %v948 = vpow.pop %v947
        %v949 = vmul.f32 %v894, 1.442695
        %v950 = vpow.pop %v949
        %v951 = vmul.f32 %v848, 1.442695
        %v952 = vpow.pop %v951
        %v953 = vmul.f32 %v897, 1.442695
        %v954 = vpow.pop %v953
        %v955 = vmul.f32 %v850, 1.442695
        %v956 = vpow.pop %v955
        %v957 = vmul.f32 %v899, 1.442695
        %v958 = vpow.pop %v957
        %v959 = vmul.f32 %v853, 1.442695
        %v960 = vpow.pop %v959
        %v961 = vmul.f32 %v902, 1.442695
        %v962 = vpow.pop %v961
        %v963 = vmul.f32 %v855, 1.442695
        %v964 = vpow.pop %v963
        %v965 = vmul.f32 %v904, 1.442695
        %v966 = vpow.pop %v965
        %v967 = vmul.f32 %v858, 1.442695
        %v968 = vpow.pop %v967
        %v969 = vmul.f32 %v907, 1.442695
        %v970 = vpow.pop %v969
        %v971 = vmul.f32 %v860, 1.442695
        %v972 = vpow.pop %v971
        %v973 = vmul.f32 %v909, 1.442695
        %v974 = vpow.pop %v973
        %v975 = vlaneseq
        %v976 = vand.u32 %v975, 127
        %v977 = vadd.s32 %v976, 128
        %vm978 = vcmp.ge.s32.totalorder %v976, 10
        %vm979 = vcmp.ge.s32.totalorder %v977, 10
        %vm980 = vcmp.lt.s32.totalorder %v976, 200
        %vm981 = vcmp.lt.s32.totalorder %v977, 200
        %vm982 = vmand %vm978, %vm980
        %vm983 = vmand %vm979, %vm981
        %v984 = vsel %vm982, %v912, 0.0
        %v985 = vsel %vm983, %v914, 0.0
        %v986 = vsel %vm982, %v916, 0.0
        %v987 = vsel %vm983, %v918, 0.0
        %v988 = vsel %vm982, %v920, 0.0
        %v989 = vsel %vm983, %v922, 0.0
        %v990 = vsel %vm982, %v924, 0.0
        %v991 = vsel %vm983, %v926, 0.0
        %v992 = vsel %vm982, %v928, 0.0
        %v993 = vsel %vm983, %v930, 0.0
        %v994 = vsel %vm982, %v932, 0.0
        %v995 = vsel %vm983, %v934, 0.0
        %v996 = vsel %vm982, %v936, 0.0
        %v997 = vsel %vm983, %v938, 0.0
        %v998 = vsel %vm982, %v940, 0.0
        %v999 = vsel %vm983, %v942, 0.0
        %v1000 = vsel %vm982, %v944, 0.0
        %v1001 = vsel %vm983, %v946, 0.0
        %v1002 = vsel %vm982, %v948, 0.0
        %v1003 = vsel %vm983, %v950, 0.0
        %v1004 = vsel %vm982, %v952, 0.0
        %v1005 = vsel %vm983, %v954, 0.0
        %v1006 = vsel %vm982, %v956, 0.0
        %v1007 = vsel %vm983, %v958, 0.0
        %v1008 = vsel %vm982, %v960, 0.0
        %v1009 = vsel %vm983, %v962, 0.0
        %v1010 = vsel %vm982, %v964, 0.0
        %v1011 = vsel %vm983, %v966, 0.0
        %v1012 = vsel %vm982, %v968, 0.0
        %v1013 = vsel %vm983, %v970, 0.0
        %v1014 = vsel %vm982, %v972, 0.0
        %v1015 = vsel %vm983, %v974, 0.0
        %v1016 = vadd.f32 %v984, %v985
        %1017 = vadd.xlane.f32.xlu0 %v1016
        %v1018 = vpop.xlane.xlu0 %1017
        %v1019 = vadd.f32 %v986, %v987
        %1020 = vadd.xlane.f32.xlu0 %v1019
        %v1021 = vpop.xlane.xlu0 %1020
        %v1022 = vadd.f32 %v988, %v989
        %1023 = vadd.xlane.f32.xlu0 %v1022
        %v1024 = vpop.xlane.xlu0 %1023
        %v1025 = vadd.f32 %v990, %v991
        %1026 = vadd.xlane.f32.xlu0 %v1025
        %v1027 = vpop.xlane.xlu0 %1026
        %v1028 = vadd.f32 %v992, %v993
        %1029 = vadd.xlane.f32.xlu0 %v1028
        %v1030 = vpop.xlane.xlu0 %1029
        %v1031 = vadd.f32 %v994, %v995
        %1032 = vadd.xlane.f32.xlu0 %v1031
        %v1033 = vpop.xlane.xlu0 %1032
        %v1034 = vadd.f32 %v996, %v997
        %1035 = vadd.xlane.f32.xlu0 %v1034
        %v1036 = vpop.xlane.xlu0 %1035
        %v1037 = vadd.f32 %v998, %v999
        %1038 = vadd.xlane.f32.xlu0 %v1037
        %v1039 = vpop.xlane.xlu0 %1038
        %v1040 = vadd.f32 %v1000, %v1001
        %1041 = vadd.xlane.f32.xlu0 %v1040
        %v1042 = vpop.xlane.xlu0 %1041
        %v1043 = vadd.f32 %v1002, %v1003
        %1044 = vadd.xlane.f32.xlu0 %v1043
        %v1045 = vpop.xlane.xlu0 %1044
        %v1046 = vadd.f32 %v1004, %v1005
        %1047 = vadd.xlane.f32.xlu0 %v1046
        %v1048 = vpop.xlane.xlu0 %1047
        %v1049 = vadd.f32 %v1006, %v1007
        %1050 = vadd.xlane.f32.xlu0 %v1049
        %v1051 = vpop.xlane.xlu0 %1050
        %v1052 = vadd.f32 %v1008, %v1009
        %1053 = vadd.xlane.f32.xlu0 %v1052
        %v1054 = vpop.xlane.xlu0 %1053
        %v1055 = vadd.f32 %v1010, %v1011
        %1056 = vadd.xlane.f32.xlu0 %v1055
        %v1057 = vpop.xlane.xlu0 %1056
        %v1058 = vadd.f32 %v1012, %v1013
        %1059 = vadd.xlane.f32.xlu0 %v1058
        %v1060 = vpop.xlane.xlu0 %1059
        %v1061 = vadd.f32 %v1014, %v1015
        %1062 = vadd.xlane.f32.xlu0 %v1061
        %v1063 = vpop.xlane.xlu0 %1062
        %v1064 = vrcp.pop %v1018
        %v1065 = vmul.f32 %v1018, %v1064
        %v1066 = vsub.f32 1.0, %v1065
        %v1067 = vmul.f32 %v1064, %v1066
        %v1068 = vadd.f32 %v1064, %v1067
        %vm1069 = vweird.f32 %v1018
        %vm1070 = vweird.f32 %v1064
        %vm1071 = vmor %vm1069, %vm1070
        %v1072 = vsel %vm1071, %v1064, %v1068
        %v1073 = vand.u32 2147483647, %v1018
        %vm1074 = vcmp.eq.f32.partialorder %v1073, 8.507059e+37
        %v1075 = vand.u32 %v1018, 2147483648
        %v1076 = vor.u32 1.1754944e-38, %v1075
        %v1077 = vsel %vm1074, %v1076, %v1072
        %v1078 = vrcp.pop %v1021
        %v1079 = vmul.f32 %v1021, %v1078
        %v1080 = vsub.f32 1.0, %v1079
        %v1081 = vmul.f32 %v1078, %v1080
        %v1082 = vadd.f32 %v1078, %v1081
        %vm1083 = vweird.f32 %v1021
        %vm1084 = vweird.f32 %v1078
        %vm1085 = vmor %vm1083, %vm1084
        %v1086 = vsel %vm1085, %v1078, %v1082
        %v1087 = vand.u32 2147483647, %v1021
        %vm1088 = vcmp.eq.f32.partialorder %v1087, 8.507059e+37
        %v1089 = vand.u32 %v1021, 2147483648
        %v1090 = vor.u32 1.1754944e-38, %v1089
        %v1091 = vsel %vm1088, %v1090, %v1086
        %v1092 = vrcp.pop %v1024
        %v1093 = vmul.f32 %v1024, %v1092
        %v1094 = vsub.f32 1.0, %v1093
        %v1095 = vmul.f32 %v1092, %v1094
        %v1096 = vadd.f32 %v1092, %v1095
        %vm1097 = vweird.f32 %v1024
        %vm1098 = vweird.f32 %v1092
        %vm1099 = vmor %vm1097, %vm1098
        %v1100 = vsel %vm1099, %v1092, %v1096
        %v1101 = vand.u32 2147483647, %v1024
        %vm1102 = vcmp.eq.f32.partialorder %v1101, 8.507059e+37
        %v1103 = vand.u32 %v1024, 2147483648
        %v1104 = vor.u32 1.1754944e-38, %v1103
        %v1105 = vsel %vm1102, %v1104, %v1100
        %v1106 = vrcp.pop %v1027
        %v1107 = vmul.f32 %v1027, %v1106
        %v1108 = vsub.f32 1.0, %v1107
        %v1109 = vmul.f32 %v1106, %v1108
        %v1110 = vadd.f32 %v1106, %v1109
        %vm1111 = vweird.f32 %v1027
        %vm1112 = vweird.f32 %v1106
        %vm1113 = vmor %vm1111, %vm1112
        %v1114 = vsel %vm1113, %v1106, %v1110
        %v1115 = vand.u32 2147483647, %v1027
        %vm1116 = vcmp.eq.f32.partialorder %v1115, 8.507059e+37
        %v1117 = vand.u32 %v1027, 2147483648
        %v1118 = vor.u32 1.1754944e-38, %v1117
        %v1119 = vsel %vm1116, %v1118, %v1114
        %v1120 = vrcp.pop %v1030
        %v1121 = vmul.f32 %v1030, %v1120
        %v1122 = vsub.f32 1.0, %v1121
        %v1123 = vmul.f32 %v1120, %v1122
        %v1124 = vadd.f32 %v1120, %v1123
        %vm1125 = vweird.f32 %v1030
        %vm1126 = vweird.f32 %v1120
        %vm1127 = vmor %vm1125, %vm1126
        %v1128 = vsel %vm1127, %v1120, %v1124
        %v1129 = vand.u32 2147483647, %v1030
        %vm1130 = vcmp.eq.f32.partialorder %v1129, 8.507059e+37
        %v1131 = vand.u32 %v1030, 2147483648
        %v1132 = vor.u32 1.1754944e-38, %v1131
        %v1133 = vsel %vm1130, %v1132, %v1128
        %v1134 = vrcp.pop %v1033
        %v1135 = vmul.f32 %v1033, %v1134
        %v1136 = vsub.f32 1.0, %v1135
        %v1137 = vmul.f32 %v1134, %v1136
        %v1138 = vadd.f32 %v1134, %v1137
        %vm1139 = vweird.f32 %v1033
        %vm1140 = vweird.f32 %v1134
        %vm1141 = vmor %vm1139, %vm1140
        %v1142 = vsel %vm1141, %v1134, %v1138
        %v1143 = vand.u32 2147483647, %v1033
        %vm1144 = vcmp.eq.f32.partialorder %v1143, 8.507059e+37
        %v1145 = vand.u32 %v1033, 2147483648
        %v1146 = vor.u32 1.1754944e-38, %v1145
        %v1147 = vsel %vm1144, %v1146, %v1142
        %v1148 = vrcp.pop %v1036
        %v1149 = vmul.f32 %v1036, %v1148
        %v1150 = vsub.f32 1.0, %v1149
        %v1151 = vmul.f32 %v1148, %v1150
        %v1152 = vadd.f32 %v1148, %v1151
        %vm1153 = vweird.f32 %v1036
        %vm1154 = vweird.f32 %v1148
        %vm1155 = vmor %vm1153, %vm1154
        %v1156 = vsel %vm1155, %v1148, %v1152
        %v1157 = vand.u32 2147483647, %v1036
        %vm1158 = vcmp.eq.f32.partialorder %v1157, 8.507059e+37
        %v1159 = vand.u32 %v1036, 2147483648
        %v1160 = vor.u32 1.1754944e-38, %v1159
        %v1161 = vsel %vm1158, %v1160, %v1156
        %v1162 = vrcp.pop %v1039
        %v1163 = vmul.f32 %v1039, %v1162
        %v1164 = vsub.f32 1.0, %v1163
        %v1165 = vmul.f32 %v1162, %v1164
        %v1166 = vadd.f32 %v1162, %v1165
        %vm1167 = vweird.f32 %v1039
        %vm1168 = vweird.f32 %v1162
        %vm1169 = vmor %vm1167, %vm1168
        %v1170 = vsel %vm1169, %v1162, %v1166
        %v1171 = vand.u32 2147483647, %v1039
        %vm1172 = vcmp.eq.f32.partialorder %v1171, 8.507059e+37
        %v1173 = vand.u32 %v1039, 2147483648
        %v1174 = vor.u32 1.1754944e-38, %v1173
        %v1175 = vsel %vm1172, %v1174, %v1170
        %v1176 = vrcp.pop %v1042
        %v1177 = vmul.f32 %v1042, %v1176
        %v1178 = vsub.f32 1.0, %v1177
        %v1179 = vmul.f32 %v1176, %v1178
        %v1180 = vadd.f32 %v1176, %v1179
        %vm1181 = vweird.f32 %v1042
        %vm1182 = vweird.f32 %v1176
        %vm1183 = vmor %vm1181, %vm1182
        %v1184 = vsel %vm1183, %v1176, %v1180
        %v1185 = vand.u32 2147483647, %v1042
        %vm1186 = vcmp.eq.f32.partialorder %v1185, 8.507059e+37
        %v1187 = vand.u32 %v1042, 2147483648
        %v1188 = vor.u32 1.1754944e-38, %v1187
        %v1189 = vsel %vm1186, %v1188, %v1184
        %v1190 = vrcp.pop %v1045
        %v1191 = vmul.f32 %v1045, %v1190
        %v1192 = vsub.f32 1.0, %v1191
        %v1193 = vmul.f32 %v1190, %v1192
        %v1194 = vadd.f32 %v1190, %v1193
        %vm1195 = vweird.f32 %v1045
        %vm1196 = vweird.f32 %v1190
        %vm1197 = vmor %vm1195, %vm1196
        %v1198 = vsel %vm1197, %v1190, %v1194
        %v1199 = vand.u32 2147483647, %v1045
        %vm1200 = vcmp.eq.f32.partialorder %v1199, 8.507059e+37
        %v1201 = vand.u32 %v1045, 2147483648
        %v1202 = vor.u32 1.1754944e-38, %v1201
        %v1203 = vsel %vm1200, %v1202, %v1198
        %v1204 = vrcp.pop %v1048
        %v1205 = vmul.f32 %v1048, %v1204
        %v1206 = vsub.f32 1.0, %v1205
        %v1207 = vmul.f32 %v1204, %v1206
        %v1208 = vadd.f32 %v1204, %v1207
        %vm1209 = vweird.f32 %v1048
        %vm1210 = vweird.f32 %v1204
        %vm1211 = vmor %vm1209, %vm1210
        %v1212 = vsel %vm1211, %v1204, %v1208
        %v1213 = vand.u32 2147483647, %v1048
        %vm1214 = vcmp.eq.f32.partialorder %v1213, 8.507059e+37
        %v1215 = vand.u32 %v1048, 2147483648
        %v1216 = vor.u32 1.1754944e-38, %v1215
        %v1217 = vsel %vm1214, %v1216, %v1212
        %v1218 = vrcp.pop %v1051
        %v1219 = vmul.f32 %v1051, %v1218
        %v1220 = vsub.f32 1.0, %v1219
        %v1221 = vmul.f32 %v1218, %v1220
        %v1222 = vadd.f32 %v1218, %v1221
        %vm1223 = vweird.f32 %v1051
        %vm1224 = vweird.f32 %v1218
        %vm1225 = vmor %vm1223, %vm1224
        %v1226 = vsel %vm1225, %v1218, %v1222
        %v1227 = vand.u32 2147483647, %v1051
        %vm1228 = vcmp.eq.f32.partialorder %v1227, 8.507059e+37
        %v1229 = vand.u32 %v1051, 2147483648
        %v1230 = vor.u32 1.1754944e-38, %v1229
        %v1231 = vsel %vm1228, %v1230, %v1226
        %v1232 = vrcp.pop %v1054
        %v1233 = vmul.f32 %v1054, %v1232
        %v1234 = vsub.f32 1.0, %v1233
        %v1235 = vmul.f32 %v1232, %v1234
        %v1236 = vadd.f32 %v1232, %v1235
        %vm1237 = vweird.f32 %v1054
        %vm1238 = vweird.f32 %v1232
        %vm1239 = vmor %vm1237, %vm1238
        %v1240 = vsel %vm1239, %v1232, %v1236
        %v1241 = vand.u32 2147483647, %v1054
        %vm1242 = vcmp.eq.f32.partialorder %v1241, 8.507059e+37
        %v1243 = vand.u32 %v1054, 2147483648
        %v1244 = vor.u32 1.1754944e-38, %v1243
        %v1245 = vsel %vm1242, %v1244, %v1240
        %v1246 = vrcp.pop %v1057
        %v1247 = vmul.f32 %v1057, %v1246
        %v1248 = vsub.f32 1.0, %v1247
        %v1249 = vmul.f32 %v1246, %v1248
        %v1250 = vadd.f32 %v1246, %v1249
        %vm1251 = vweird.f32 %v1057
        %vm1252 = vweird.f32 %v1246
        %vm1253 = vmor %vm1251, %vm1252
        %v1254 = vsel %vm1253, %v1246, %v1250
        %v1255 = vand.u32 2147483647, %v1057
        %vm1256 = vcmp.eq.f32.partialorder %v1255, 8.507059e+37
        %v1257 = vand.u32 %v1057, 2147483648
        %v1258 = vor.u32 1.1754944e-38, %v1257
        %v1259 = vsel %vm1256, %v1258, %v1254
        %v1260 = vrcp.pop %v1060
        %v1261 = vmul.f32 %v1060, %v1260
        %v1262 = vsub.f32 1.0, %v1261
        %v1263 = vmul.f32 %v1260, %v1262
        %v1264 = vadd.f32 %v1260, %v1263
        %vm1265 = vweird.f32 %v1060
        %vm1266 = vweird.f32 %v1260
        %vm1267 = vmor %vm1265, %vm1266
        %v1268 = vsel %vm1267, %v1260, %v1264
        %v1269 = vand.u32 2147483647, %v1060
        %vm1270 = vcmp.eq.f32.partialorder %v1269, 8.507059e+37
        %v1271 = vand.u32 %v1060, 2147483648
        %v1272 = vor.u32 1.1754944e-38, %v1271
        %v1273 = vsel %vm1270, %v1272, %v1268
        %v1274 = vrcp.pop %v1063
        %v1275 = vmul.f32 %v1063, %v1274
        %v1276 = vsub.f32 1.0, %v1275
        %v1277 = vmul.f32 %v1274, %v1276
        %v1278 = vadd.f32 %v1274, %v1277
        %vm1279 = vweird.f32 %v1063
        %vm1280 = vweird.f32 %v1274
        %vm1281 = vmor %vm1279, %vm1280
        %v1282 = vsel %vm1281, %v1274, %v1278
        %v1283 = vand.u32 2147483647, %v1063
        %vm1284 = vcmp.eq.f32.partialorder %v1283, 8.507059e+37
        %v1285 = vand.u32 %v1063, 2147483648
        %v1286 = vor.u32 1.1754944e-38, %v1285
        %v1287 = vsel %vm1284, %v1286, %v1282
        %v1288 = vmul.f32 %v912, %v1077
        %v1289 = vmul.f32 %v914, %v1077
        %v1290 = vmul.f32 %v916, %v1091
        %v1291 = vmul.f32 %v918, %v1091
        %v1292 = vmul.f32 %v920, %v1105
        %v1293 = vmul.f32 %v922, %v1105
        %v1294 = vmul.f32 %v924, %v1119
        %v1295 = vmul.f32 %v926, %v1119
        %v1296 = vmul.f32 %v928, %v1133
        %v1297 = vmul.f32 %v930, %v1133
        %v1298 = vmul.f32 %v932, %v1147
        %v1299 = vmul.f32 %v934, %v1147
        %v1300 = vmul.f32 %v936, %v1161
        %v1301 = vmul.f32 %v938, %v1161
        %v1302 = vmul.f32 %v940, %v1175
        %v1303 = vmul.f32 %v942, %v1175
        %v1304 = vmul.f32 %v944, %v1189
        %v1305 = vmul.f32 %v946, %v1189
        %v1306 = vmul.f32 %v948, %v1203
        %v1307 = vmul.f32 %v950, %v1203
        %v1308 = vmul.f32 %v952, %v1217
        %v1309 = vmul.f32 %v954, %v1217
        %v1310 = vmul.f32 %v956, %v1231
        %v1311 = vmul.f32 %v958, %v1231
        %v1312 = vmul.f32 %v960, %v1245
        %v1313 = vmul.f32 %v962, %v1245
        %v1314 = vmul.f32 %v964, %v1259
        %v1315 = vmul.f32 %v966, %v1259
        %v1316 = vmul.f32 %v968, %v1273
        %v1317 = vmul.f32 %v970, %v1273
        %v1318 = vmul.f32 %v972, %v1287
        %v1319 = vmul.f32 %v974, %v1287
        %1320 = vst [vmem:[%s362] sm:$0xff] %v1288
        %1321 = vst [vmem:[%s362 + $0x8] sm:$0xff] %v1289
        %1322 = vst [vmem:[%s362 + $0x10] sm:$0xff] %v1290
        %1323 = vst [vmem:[%s362 + $0x18] sm:$0xff] %v1291
        %1324 = vst [vmem:[%s362 + $0x20] sm:$0xff] %v1292
        %1325 = vst [vmem:[%s362 + $0x28] sm:$0xff] %v1293
        %1326 = vst [vmem:[%s362 + $0x30] sm:$0xff] %v1294
        %1327 = vst [vmem:[%s362 + $0x38] sm:$0xff] %v1295
        %1328 = vst [vmem:[%s362 + $0x40] sm:$0xff] %v1296
        %1329 = vst [vmem:[%s362 + $0x48] sm:$0xff] %v1297
        %1330 = vst [vmem:[%s362 + $0x50] sm:$0xff] %v1298
        %1331 = vst [vmem:[%s362 + $0x58] sm:$0xff] %v1299
        %1332 = vst [vmem:[%s362 + $0x60] sm:$0xff] %v1300
        %1333 = vst [vmem:[%s362 + $0x68] sm:$0xff] %v1301
        %1334 = vst [vmem:[%s362 + $0x70] sm:$0xff] %v1302
        %1335 = vst [vmem:[%s362 + $0x78] sm:$0xff] %v1303
        %1336 = vst [vmem:[%s362 + $0x80] sm:$0xff] %v1304
        %1337 = vst [vmem:[%s362 + $0x88] sm:$0xff] %v1305
        %1338 = vst [vmem:[%s362 + $0x90] sm:$0xff] %v1306
        %1339 = vst [vmem:[%s362 + $0x98] sm:$0xff] %v1307
        %1340 = vst [vmem:[%s362 + $0xa0] sm:$0xff] %v1308
        %1341 = vst [vmem:[%s362 + $0xa8] sm:$0xff] %v1309
        %1342 = vst [vmem:[%s362 + $0xb0] sm:$0xff] %v1310
        %1343 = vst [vmem:[%s362 + $0xb8] sm:$0xff] %v1311
        %1344 = vst [vmem:[%s362 + $0xc0] sm:$0xff] %v1312
        %1345 = vst [vmem:[%s362 + $0xc8] sm:$0xff] %v1313
        %1346 = vst [vmem:[%s362 + $0xd0] sm:$0xff] %v1314
        %1347 = vst [vmem:[%s362 + $0xd8] sm:$0xff] %v1315
        %1348 = vst [vmem:[%s362 + $0xe0] sm:$0xff] %v1316
        %1349 = vst [vmem:[%s362 + $0xe8] sm:$0xff] %v1317
        %1350 = vst [vmem:[%s362 + $0xf0] sm:$0xff] %v1318
        %1351 = vst [vmem:[%s362 + $0xf8] sm:$0xff] %v1319
        %s1352 = sand.u32 %s186, 1
        %s1353 = scalar_lea.sflag [#allocation4], %s1352
        %s1354 = sand.u32 %s186, 1
        %s1355 = smul.addr %s1354, 256
        %s1356 = scalar_lea.vmem [#allocation11], %s1355
        // Predicated region
        $region69: #{tpu_custom_call.1} parent=47 // pred_check
          %p1357 = pneg %p196
        $region70: #{tpu_custom_call.1} parent=47 // pred_check_branch
          %1359 = sbr.rel (%p1357) target = $region72
        $region71: #{tpu_custom_call.1} parent=47 // pred_region
          %s1360 = smul.u32 16, %s26
          %1362 = vsyncadd %s1353, 0
          %s1363 = smul.addr %s1360, 2
          %s1364 = smul.addr %s1363, 8
          %s1365 = scalar_lea.hbm %s7, %s1364
          %s1366 = sshll.u32 %s1356, 4
          %s1367 = int_to_ptr.vmem [resolvable:$true] %s1366
          %s1368 = sshll.u32 %s1365, 4
          %s1369 = int_to_ptr.hbm [resolvable:$true] %s1368
          %1374 = dma.vmem_to_hbm [thread:$0]  %s1367, 4096, %s1369, %s1353, 256, 256, 16
        $region72: #{tpu_custom_call.1} parent=47 // pred_fallthru
          _
      $region48: #{tpu_custom_call.1} parent=5 // pred_fallthru
        _
      %p1375 = scmp.le.s32.totalorder 2, %s21
      // Predicated region
      $region73: #{tpu_custom_call.1} parent=5 // pred_check
        %p1376 = pneg %p1375
      $region74: #{tpu_custom_call.1} parent=5 // pred_check_branch
        %1378 = sbr.rel (%p1376) target = $region76
      $region75: #{tpu_custom_call.1} parent=5 // pred_region
        %s1379 = ssub.s32 %s21, 2
        // Predicated region
        $region77: #{tpu_custom_call.1} parent=75 // pred_check
          %p1380 = pneg %p202
        $region78: #{tpu_custom_call.1} parent=75 // pred_check_branch
          %1382 = sbr.rel (%p1380) target = $region80
        $region79: #{tpu_custom_call.1} parent=75 // pred_region
          %s1383 = sand.u32 %s187, 1
          %s1384 = scalar_lea.sflag [#allocation4], %s1383
          %s1385 = sand.u32 %s187, 1
          %s1386 = smul.addr %s1385, 256
          %s1387 = scalar_lea.vmem [#allocation11], %s1386
          %1389 = dma.done %s1384, 4096
        $region80: #{tpu_custom_call.1} parent=75 // pred_fallthru
          _
      $region76: #{tpu_custom_call.1} parent=5 // pred_fallthru
        _
    $region6: #{tpu_custom_call.1} parent=1 // loop_footer
      %s25 = sadd.s32 1, %s21
    $region7: #{tpu_custom_call.1} parent=1 // loop_footer_branch
      %20 = sbr.rel target = $region3
    $region8: #{tpu_custom_call.1} parent=1 // loop_exit
      _
    %1390 = vsyncpa [#allocation3], 1
    %s1391 = scalar_lea.sflag [#allocation3], 1
    %1392 = vsyncpa %s1391, 1
    %1393 = vsyncpa [#allocation6], 1
    %1394 = vsyncpa [#allocation9], 1
    %1395 = vsyncpa [#allocation4], 1
    %s1396 = scalar_lea.sflag [#allocation4], 1
    %1397 = vsyncpa %s1396, 1

</llo_original>
